<compile_context>
chip_gen: v5e
topology: v5e:2x2
jax: 0.10.0
libtpu: 0.0.40
codegen_flags: <defaults>
</compile_context>

<pallas_src>
import jax
import jax.numpy as jnp
from jax.experimental import pallas as pl
from jax.experimental.pallas import tpu as pltpu


# ------------------------------ kernels ------------------------------------ #

def _local_linear_kernel_bias(x_ref, w_ref, b_ref, o_ref):
    # x_ref: (TB, TF, K)   w_ref: (TF, K)   b_ref: (1, TF)   o_ref: (TB, TF)
    x = x_ref[...].astype(jnp.float32)
    w = w_ref[...].astype(jnp.float32)
    acc = jnp.sum(x * w[None, :, :], axis=-1)          # lane-reduce over K
    acc = acc + b_ref[...].astype(jnp.float32)          # (1, TF) broadcast
    o_ref[...] = acc.astype(o_ref.dtype)                # lane-dense (TB, TF) store


def _local_linear_kernel_nobias(x_ref, w_ref, o_ref):
    x = x_ref[...].astype(jnp.float32)
    w = w_ref[...].astype(jnp.float32)
    acc = jnp.sum(x * w[None, :, :], axis=-1)
    o_ref[...] = acc.astype(o_ref.dtype)


# ------------------------------ tiling -------------------------------------- #

def _round_up(x, m):
    return ((x + m - 1) // m) * m


def _vmem_limits():
    """(vmem_limit_bytes, per-step tile budget), generation-aware."""
    try:
        cap = int(pltpu.get_tpu_info().vmem_capacity_bytes)
    except Exception:
        cap = 64 * 1024 * 1024          # v7x per-TensorCore VMEM (smallest part)
    vmem_limit = min((cap * 3) // 4, 96 * 1024 * 1024)   # 48 MiB on v7x, 96 MiB v5e/v6e
    return vmem_limit, vmem_limit // 2


def _block_vmem_bytes(tb, tf, k, itemsize):
    """Conservative VMEM footprint of one grid step: double-buffered x/out
    blocks, resident weight/bias blocks, plus the in-kernel f32 temporaries
    (upcast product + accumulator).  Lane dim rounds to 128, sublane to 8."""
    k_lanes = _round_up(k, 128)
    tf_sub = _round_up(tf, 8)
    tf_lanes = _round_up(tf, 128)
    tb_sub = _round_up(tb, 8)
    x_blk = tb * tf_sub * k_lanes * itemsize
    w_blk = tf_sub * k_lanes * itemsize
    b_blk = 8 * tf_lanes * itemsize
    o_blk = tb_sub * tf_lanes * itemsize
    f32_tmp = tb * tf_sub * k_lanes * 4 + tb_sub * tf_lanes * 4
    return 2 * (x_blk + o_blk) + 2 * (w_blk + b_blk) + f32_tmp


def _choose_tiles(B, F, K, itemsize, budget):
    """Pick (TB, TF).  TF is full F or a multiple of 128; TB is full B (when
    B <= 8) or a multiple of 8.  Partial last blocks are handled by a cdiv grid."""
    tb_min = B if B < 8 else 8

    # Feature tile: full F when it fits with the minimal batch tile, otherwise
    # the largest multiple of 128 that fits (creates extra parallel grid steps).
    TF = F
    if F > 128 and _block_vmem_bytes(tb_min, F, K, itemsize) > budget:
        TF = 128
        while (TF + 128 <= F and
               _block_vmem_bytes(tb_min, TF + 128, K, itemsize) <= budget):
            TF += 128
    # TODO(synk): if K alone (lane-padded to 128) overflows the budget at the
    # minimal tile, a K-tiled reduction grid axis with an accumulator would be
    # needed; kernel_size is small in practice so this is not implemented.

    # Batch tile: largest multiple of 8 fitting the budget (full B when B <= 8).
    if B <= 8:
        TB = B
    else:
        base = _block_vmem_bytes(0, TF, K, itemsize)
        per8 = max(1, _block_vmem_bytes(8, TF, K, itemsize) - base)
        n8 = max(1, (budget - base) // per8)
        TB = int(min(n8 * 8, (B // 8) * 8))
        # Guarantee >= 2 grid steps so a 2-TC part (v7x) can shard the
        # "parallel" axes; negligible cost (one extra step) on 1-TC parts.
        if TF >= F and TB >= B and B >= 16:
            TB = int(_round_up(pl.cdiv(B, 2), 8))
    return TB, TF


# ------------------------------ wrapper ------------------------------------ #

def local_linear(x, weight, bias=None):
    """x: (B, F, K); weight: (F, K, 1); bias: (F, 1) or None -> (B, F, 1)."""
    B, F, K = x.shape
    assert weight.shape == (F, K, 1), weight.shape

    w2d = weight[..., 0]                       # (F, K) -- cheap squeeze, no HBM pass
    itemsize = jnp.dtype(x.dtype).itemsize

    vmem_limit, budget = _vmem_limits()
    TB, TF = _choose_tiles(B, F, K, itemsize, budget)
    n_f = int(pl.cdiv(F, TF))
    n_b = int(pl.cdiv(B, TB))
    grid = (n_f, n_b)                          # batch innermost: weights stay put

    in_specs = [
        pl.BlockSpec((TB, TF, K), lambda f, b: (b, f, 0)),   # streamed x blocks
        pl.BlockSpec((TF, K), lambda f, b: (f, 0)),          # resident weights
    ]
    args = [x, w2d]

    if bias is not None:
        assert bias.shape == (F, 1), bias.shape
        in_specs.append(pl.BlockSpec((1, TF), lambda f, b: (0, f)))   # resident bias
        args.append(jnp.transpose(bias))                              # (1, F), tiny
        kernel = _local_linear_kernel_bias
    else:
        kernel = _local_linear_kernel_nobias

    cost = pl.CostEstimate(
        flops=2 * B * F * K,
        transcendentals=0,
        bytes_accessed=(B * F * K + B * F + F * K + F) * itemsize,
    )

    out2d = pl.pallas_call(
        kernel,
        out_shape=jax.ShapeDtypeStruct((B, F), x.dtype),
        grid=grid,
        in_specs=in_specs,
        out_specs=pl.BlockSpec((TB, TF), lambda f, b: (b, f)),   # lane-dense output
        compiler_params=pltpu.CompilerParams(
            dimension_semantics=("parallel", "parallel"),
            vmem_limit_bytes=vmem_limit,
        ),
        cost_estimate=cost,
    )(*args)

    return out2d[:, :, None]                   # (B, F, 1) -- free reshape


# ------------------------------ test ---------------------------------------- #

if __name__ == "__main__":
    key = jax.random.PRNGKey(0)
    kx, kw, kb, kx2, kw2, kb2 = jax.random.split(key, 6)

    # Small shapes consistent with the module's forward contract.
    B, F, K = 2, 4, 16  # batch, num_features, kernel_size
    x = jax.random.normal(kx, (B, F, K), dtype=jnp.float32)
    weight = jax.random.normal(kw, (F, K, 1), dtype=jnp.float32)
    bias = jax.random.normal(kb, (F, 1), dtype=jnp.float32)

    out = jax.block_until_ready(local_linear(x, weight, bias))
    ref = jnp.einsum("bfk,fk->bf", x, weight[..., 0])[..., None] + bias[None]
    assert out.shape == (B, F, 1), out.shape
    assert jnp.allclose(out, ref, atol=1e-5, rtol=1e-5), "mismatch vs reference"

    # Bias-free path.
    out_nb = jax.block_until_ready(local_linear(x, weight, None))
    ref_nb = jnp.einsum("bfk,fk->bf", x, weight[..., 0])[..., None]
    assert jnp.allclose(out_nb, ref_nb, atol=1e-5, rtol=1e-5), "mismatch (no bias)"

    # Moderate shape exercising the multi-step (batch-tiled) grid.
    B2, F2, K2 = 32, 256, 3
    x2 = jax.random.normal(kx2, (B2, F2, K2), dtype=jnp.float32)
    w2 = jax.random.normal(kw2, (F2, K2, 1), dtype=jnp.float32)
    b2 = jax.random.normal(kb2, (F2, 1), dtype=jnp.float32)
    out2 = jax.block_until_ready(local_linear(x2, w2, b2))
    ref2 = jnp.einsum("bfk,fk->bf", x2, w2[..., 0])[..., None] + b2[None]
    assert jnp.allclose(out2, ref2, atol=1e-4, rtol=1e-4), "mismatch (tiled grid)"

    print("KERNEL_OK")
</pallas_src>

<mosaic_0001>
module attributes {stable_mosaic.version = 11 : i64} {
  func.func @_local_linear_kernel_bias(%arg0: i32, %arg1: i32, %arg2: memref<2x4x16xf32, #tpu.memory_space<vmem>>, %arg3: memref<4x16xf32, #tpu.memory_space<vmem>>, %arg4: memref<1x4xf32, #tpu.memory_space<vmem>>, %arg5: memref<2x4xf32, #tpu.memory_space<vmem>>) attributes {dimension_semantics = [#tpu.dimension_semantics<parallel>, #tpu.dimension_semantics<parallel>], iteration_bounds = array<i64: 1, 1>, scalar_prefetch = 0 : i64, scratch_operands = 0 : i64, tpu.core_type = #tpu.core_type<tc>, window_params = [{transform_indices = @transform_0, window_bounds = array<i64: 2, 4, 16>}, {transform_indices = @transform_1, window_bounds = array<i64: 4, 16>}, {transform_indices = @transform_2, window_bounds = array<i64: 1, 4>}, {transform_indices = @transform_3, window_bounds = array<i64: 2, 4>}]} {
    %c0 = arith.constant 0 : index
    %c0_0 = arith.constant 0 : index
    %c0_1 = arith.constant 0 : index
    %0 = vector.load %arg2[%c0, %c0_0, %c0_1] : memref<2x4x16xf32, #tpu.memory_space<vmem>>, vector<2x4x16xf32>
    %c0_2 = arith.constant 0 : index
    %c0_3 = arith.constant 0 : index
    %1 = vector.load %arg3[%c0_2, %c0_3] : memref<4x16xf32, #tpu.memory_space<vmem>>, vector<4x16xf32>
    %2 = vector.shape_cast %1 : vector<4x16xf32> to vector<1x4x16xf32>
    %3 = vector.broadcast %2 : vector<1x4x16xf32> to vector<2x4x16xf32>
    %4 = arith.mulf %0, %3 : vector<2x4x16xf32>
    %cst = arith.constant dense<0.000000e+00> : vector<2x4xf32>
    %5 = vector.multi_reduction <add>, %4, %cst [2] : vector<2x4x16xf32> to vector<2x4xf32>
    %c0_4 = arith.constant 0 : index
    %c0_5 = arith.constant 0 : index
    %6 = vector.load %arg4[%c0_4, %c0_5] : memref<1x4xf32, #tpu.memory_space<vmem>>, vector<1x4xf32>
    %7 = vector.broadcast %6 : vector<1x4xf32> to vector<2x4xf32>
    %8 = arith.addf %5, %7 : vector<2x4xf32>
    %c0_6 = arith.constant 0 : index
    %c0_7 = arith.constant 0 : index
    %9 = vector.load %arg5[%c0_6, %c0_7] : memref<2x4xf32, #tpu.memory_space<vmem>>, vector<2x4xf32>
    tpu.vector_store %arg5[%c0_6, %c0_7], %8 {strides = array<i32>} : memref<2x4xf32, #tpu.memory_space<vmem>>, vector<2x4xf32>,
    return
  }
  func.func @transform_0(%arg0: i32, %arg1: i32) -> (i32, i32, i32) {
    %c0_i32 = arith.constant 0 : i32
    %c0_i32_0 = arith.constant 0 : i32
    return %arg1, %arg0, %c0_i32 : i32, i32, i32
  }
  func.func @transform_1(%arg0: i32, %arg1: i32) -> (i32, i32) {
    %c0_i32 = arith.constant 0 : i32
    %c0_i32_0 = arith.constant 0 : i32
    return %arg0, %c0_i32 : i32, i32
  }
  func.func @transform_2(%arg0: i32, %arg1: i32) -> (i32, i32) {
    %c0_i32 = arith.constant 0 : i32
    %c0_i32_0 = arith.constant 0 : i32
    return %c0_i32, %arg0 : i32, i32
  }
  func.func @transform_3(%arg0: i32, %arg1: i32) -> (i32, i32) {
    %c0_i32 = arith.constant 0 : i32
    return %arg1, %arg0 : i32, i32
  }
}

</mosaic_0001>

<llo_original>
// kernel: tpu_custom_call.1
$region0: #{tpu_custom_call.1}
  #allocation0 [shape = 'u32[]', space=smem, size = 0x4, offset = 0x4, fixed_abs, tag = 'smem constant byte address 0x4 - core index']
  #allocation1 [shape = 'u32[72,128]{1,0:T(1,128)}', space=vmem, size = 0x9000, scoped, tag = 'internal scratch']
  %s0 = inlined_call_operand.hbm [shape: f32[2,4,16], index: 0, kind: input, shape index: {}]
  %s1 = inlined_call_operand.hbm [shape: f32[4,16], index: 1, kind: input, shape index: {}]
  %s2 = inlined_call_operand.vmem [shape: f32[1,4], index: 2, kind: input, shape index: {}]
  %s3 = inlined_call_operand.hbm [shape: f32[2,4], index: 3, kind: output, shape index: {}]
  %s4 = sld [smem:[#allocation0]]
  $region30: #{tpu_custom_call.1} parent=0
    _
  %s6 = ssub.s32 1, %s4
  %s7 = scalar_select 0, %s6, %s4
  $region1: #{tpu_custom_call.1} parent=0
    #allocation2 [shape = 'u8[4096]{0}', space=vmem, size = 0x1000, scoped, tag = 'input window, operand 0, single buffered']
    #allocation3 [shape = 's32[1]{0}', space=sflag, size = 0x4, scoped, tag = 'scoped memory for tpu_custom_call.1']
    #allocation4 [shape = 's32[1]{0}', space=sflag, size = 0x4, scoped, tag = 'scoped memory for tpu_custom_call.1']
    #allocation5 [shape = 'u8[2048]{0}', space=vmem, size = 0x800, scoped, tag = 'input window, operand 1, single buffered']
    #allocation6 [shape = 's32[1]{0}', space=sflag, size = 0x4, scoped, tag = 'scoped memory for tpu_custom_call.1']
    #allocation7 [shape = 'u8[1024]{0}', space=vmem, size = 0x400, scoped, tag = 'output window, operand 0, single buffered']
    %8 = vsyncpa [#allocation3], 0
    %9 = vsyncpa [#allocation6], 0
    %10 = vsyncpa [#allocation4], 0
    // Predicated region
    $region2: #{tpu_custom_call.1} parent=1 // pred_check
      _
    $region3: #{tpu_custom_call.1} parent=1 // pred_check_branch
      %12 = sbr.rel (0) target = $region5
    $region4: #{tpu_custom_call.1} parent=1 // pred_region
      %14 = vsyncadd [#allocation3], 0
      %s15 = sshll.u32 %s0, 4
      %s16 = int_to_ptr.hbm [resolvable:$true] %s15
      %s17 = sshll.u32 [#allocation2], 4
      %s18 = int_to_ptr.vmem [resolvable:$true] %s17
      %23 = dma.hbm_to_vmem [thread:$0]  %s16, 128, %s18, [#allocation3], 64, 64, 4
    $region5: #{tpu_custom_call.1} parent=1 // pred_fallthru
      _
    // Predicated region
    $region6: #{tpu_custom_call.1} parent=1 // pred_check
      _
    $region7: #{tpu_custom_call.1} parent=1 // pred_check_branch
      %25 = sbr.rel (0) target = $region9
    $region8: #{tpu_custom_call.1} parent=1 // pred_region
      %27 = vsyncadd [#allocation6], 0
      %s29 = sshll.u32 %s1, 4
      %s30 = int_to_ptr.hbm [resolvable:$true] %s29
      %s31 = sshll.u32 [#allocation5], 4
      %s32 = int_to_ptr.vmem [resolvable:$true] %s31
      %34 = dma.hbm_to_vmem [thread:$0]  %s30, 64, %s32, [#allocation6]
    $region9: #{tpu_custom_call.1} parent=1 // pred_fallthru
      _
    // Predicated region
    $region10: #{tpu_custom_call.1} parent=1 // pred_check
      _
    $region11: #{tpu_custom_call.1} parent=1 // pred_check_branch
      %36 = sbr.rel (0) target = $region13
    $region12: #{tpu_custom_call.1} parent=1 // pred_region
      _
    $region13: #{tpu_custom_call.1} parent=1 // pred_fallthru
      _
    // Predicated region
    $region14: #{tpu_custom_call.1} parent=1 // pred_check
      _
    $region15: #{tpu_custom_call.1} parent=1 // pred_check_branch
      %38 = sbr.rel (0) target = $region17
    $region16: #{tpu_custom_call.1} parent=1 // pred_region
      %40 = dma.done [#allocation3], 128
    $region17: #{tpu_custom_call.1} parent=1 // pred_fallthru
      _
    // Predicated region
    $region18: #{tpu_custom_call.1} parent=1 // pred_check
      _
    $region19: #{tpu_custom_call.1} parent=1 // pred_check_branch
      %42 = sbr.rel (0) target = $region21
    $region20: #{tpu_custom_call.1} parent=1 // pred_region
      %44 = dma.done [#allocation6], 64
    $region21: #{tpu_custom_call.1} parent=1 // pred_fallthru
      _
    %v45 = vld [vmem:[#allocation2] sm:$0xf]
    %v46 = vld [vmem:[#allocation2 + $0x4] sm:$0xf]
    %v47 = vld [vmem:[#allocation5] sm:$0xf]
    %v48 = vmul.f32 %v45, %v47
    %v49 = vmul.f32 %v46, %v47
    %vm50 = vcmask 125952
    %v51 = vsel %vm50, %v48, 0.0
    %52 = vadd.xlane.f32.xlu0 %v51
    %v53 = vpop.xlane.xlu0 %52
    %v54 = vsel %vm50, %v49, 0.0
    %55 = vadd.xlane.f32.xlu0 %v54
    %v56 = vpop.xlane.xlu0 %55
    %v57 = vld [vmem:[%s2] sm:$0x1]
    %v59 = vperm.slane %v57, 0
    %v60 = vlaneseq
    %v61 = vshrl.u32 %v60, 7
    %63 = vset.pattern.permute.xlu0 %v61
    %64 = vperm.xlu0 %63, %v59
    %v65 = vpop.permute.xlu0 %64
    %v67 = vadd.f32 %v53, %v65
    %v68 = vadd.f32 %v56, %v65
    %71 = vset.pattern.permute.xlu0 0
    %72 = vperm.xlu0 %71, %v67
    %v73 = vpop.permute.xlu0 %72
    %74 = vset.pattern.permute.xlu0 0
    %75 = vperm.xlu0 %74, %v68
    %v76 = vpop.permute.xlu0 %75
    %v77 = vlaneseq
    %v78 = vand.u32 %v77, 127
    %v79 = vperm.slane %v73, %v78
    %v80 = vperm.slane %v76, %v78
    %vm81 = vcmask 1041409
    %v82 = vsel %vm81, %v80, %v79
    %vm84 = vcmask 25600
    %85 = vst.msk [vmem:[#allocation7] sm:$0x3] %vm84, %v82
    // Predicated region
    $region22: #{tpu_custom_call.1} parent=1 // pred_check
      _
    $region23: #{tpu_custom_call.1} parent=1 // pred_check_branch
      %87 = sbr.rel (0) target = $region25
    $region24: #{tpu_custom_call.1} parent=1 // pred_region
      %89 = vsyncadd [#allocation4], 0
      %s91 = sshll.u32 [#allocation7], 4
      %s92 = int_to_ptr.vmem [resolvable:$true] %s91
      %s93 = sshll.u32 %s3, 4
      %s94 = int_to_ptr.hbm [resolvable:$true] %s93
      %96 = dma.vmem_to_hbm [thread:$0]  %s92, 32, %s94, [#allocation4]
    $region25: #{tpu_custom_call.1} parent=1 // pred_fallthru
      _
    // Predicated region
    $region26: #{tpu_custom_call.1} parent=1 // pred_check
      _
    $region27: #{tpu_custom_call.1} parent=1 // pred_check_branch
      %98 = sbr.rel (0) target = $region29
    $region28: #{tpu_custom_call.1} parent=1 // pred_region
      %100 = dma.done [#allocation4], 32
    $region29: #{tpu_custom_call.1} parent=1 // pred_fallthru
      _
    %101 = vsyncpa [#allocation3], 1
    %102 = vsyncpa [#allocation6], 1
    %103 = vsyncpa [#allocation4], 1

</llo_original>
